<compile_context>
chip_gen: v6e
topology: v6e:2x2x1
jax: 0.10.0
libtpu: 0.0.40
codegen_flags: <defaults>
</compile_context>

<pallas_src>
import functools

import jax
import jax.numpy as jnp
from jax import lax
from jax.experimental import pallas as pl
from jax.experimental.pallas import tpu as pltpu

_LANE = 128  # TPU lane width


# ----------------------------------------------------------------------------
# Kernel 1: row-blocked softmax + UNK masking over the flattened (S*B, V) rows.
# ----------------------------------------------------------------------------
def _softmax_mask_kernel(x_ref, o_ref, *, unk_col: int):
    x = x_ref[...].astype(jnp.float32)                       # (rows, V)
    m = jnp.max(x, axis=-1, keepdims=True)
    e = jnp.exp(x - m)
    denom = jnp.sum(e, axis=-1, keepdims=True)
    # One exact reciprocal per row (EUP) + broadcast multiply; the loop is
    # HBM-bound so this is free, and it keeps word_prob within ~1 ulp of f32.
    p = e * pl.reciprocal(denom, approx=False)
    o_ref[...] = p.astype(o_ref.dtype)
    # Cheap UNK masking: unk_col is a Python int, so this is a single static
    # column overwrite instead of a per-element iota + compare + select.
    o_ref[:, unk_col:unk_col + 1] = jnp.zeros((x.shape[0], 1), o_ref.dtype)


# ----------------------------------------------------------------------------
# Kernel 2: one-shot categorical sampling from word_prob[0] (inverse CDF).
#   p_ref: (nb, B, 128) probabilities (vocab padded to nb*128, UNK already 0).
# ----------------------------------------------------------------------------
def _sample_kernel(u_ref, p_ref, idx_ref, *, v: int):
    nb, b, _ = p_ref.shape

    def blk(k):
        return p_ref[k].astype(jnp.float32)                  # (B, 128)

    # Pass 1: total probability mass per row (UNK excluded; padding is zero).
    total = lax.fori_loop(
        0, nb,
        lambda k, acc: acc + jnp.sum(blk(k), axis=-1, keepdims=True),
        jnp.zeros((b, 1), jnp.float32))

    tiny = jnp.float32(jnp.finfo(jnp.float32).tiny)
    u = jnp.clip(u_ref[...].astype(jnp.float32), tiny, jnp.float32(1.0))
    thr = u * total                                          # (B, 1), in (0, total]

    # Pass 2: per 128-lane block, accumulate
    #   cnt  += 128 for every block whose inclusive prefix is still < thr
    #   pref += exclusive prefix of the (unique) boundary block
    #   gath += the boundary block itself (select-accumulate, no gather)
    # Loop-carried state is a few tiny VPU adds -> no serial matmul chain.
    def body(k, carry):
        run, cnt, pref, gath = carry
        x = blk(k)
        bsum = jnp.sum(x, axis=-1, keepdims=True)
        new_run = run + bsum
        below = (new_run < thr).astype(jnp.float32)                  # (B,1)
        bnd = (run < thr).astype(jnp.float32) * (1.0 - below)        # boundary
        cnt = cnt + below * jnp.float32(_LANE)
        pref = pref + run * bnd
        gath = gath + x * bnd
        return new_run, cnt, pref, gath

    z1 = jnp.zeros((b, 1), jnp.float32)
    zg = jnp.zeros((b, _LANE), jnp.float32)
    _, cnt, pref, gath = lax.fori_loop(0, nb, body, (z1, z1, z1, zg))

    # Single (B,128)x(128,128) lower-triangular matmul resolves the intra-block
    # inclusive cumsum of the boundary block.
    rem = thr - pref
    r = lax.broadcasted_iota(jnp.int32, (_LANE, _LANE), 0)
    c = lax.broadcasted_iota(jnp.int32, (_LANE, _LANE), 1)
    tri = (r <= c).astype(jnp.float32)
    icum = jnp.dot(gath, tri, preferred_element_type=jnp.float32)    # (B,128)
    cnt_in = jnp.sum((icum < rem).astype(jnp.float32), axis=-1, keepdims=True)
    cnt_in = jnp.minimum(cnt_in, jnp.float32(_LANE - 1))

    idx = jnp.clip(cnt + cnt_in, jnp.float32(0.0), jnp.float32(v - 1))
    idx_ref[...] = idx.astype(jnp.int32)


# ----------------------------------------------------------------------------
# Kernel-1 tiling: generation-aware block size + vmem limit.
# ----------------------------------------------------------------------------
def _kernel1_tiling(n_rows: int, v: int, elem_bytes: int):
    """Pick (rows_per_block, vmem_limit_bytes) from the physical VMEM size."""
    try:
        vmem_cap = int(pltpu.get_tpu_info().vmem_capacity_bytes)
    except Exception:
        vmem_cap = 64 << 20                 # conservative fallback (v7x size)

    headroom = 8 << 20                      # compiler scratch headroom
    # 64 MiB on 128-MiB-VMEM chips (v5e/v6e), 48 MiB on 64-MiB v7x.
    vmem_limit = min(64 << 20, (3 * vmem_cap) // 4)
    # Per block-row: 4x (in+out, double-buffered) in the I/O dtype plus ~2
    # full-block f32 temporaries inside the softmax.
    per_row = 4 * v * elem_bytes + 2 * v * 4
    budget = max(vmem_limit - headroom, per_row)
    rows = max(budget // per_row, 1)

    if rows >= n_rows:
        # Whole problem fits in one block; still split into >= 2 grid steps so
        # the "parallel" axis can load-balance across the 2 TCs on v7x.
        if n_rows > 8:
            rows = max(((pl.cdiv(n_rows, 2) + 7) // 8) * 8, 8)
        else:
            rows = n_rows
    else:
        rows = max((rows // 8) * 8, 8)
        # If the 8-row floor binds (huge V), raise the limit instead of
        # silently overshooting the budget (review: rounding overshoot).
        vmem_limit = max(vmem_limit, min(rows * per_row + headroom, vmem_cap))
    return rows, int(vmem_limit)


# ----------------------------------------------------------------------------
# Wrapper
# ----------------------------------------------------------------------------
def sample_feedback_forward(decoder_out, u, unk_idx=-1):
    """Pallas implementation of SampleFeedBack.forward.

    Args:
      decoder_out: (S, B, V) float logits (seq-first, like the torch module).
      u: (B, 1) uniform(0,1) draws (one per batch row).
      unk_idx: UNK token index along the vocab dim (negative allowed).

    Returns:
      (word_prob, sample_idx): word_prob (S, B, V) in decoder_out's dtype with
      the UNK column zeroed; sample_idx (B, 1) int32 (the torch forward's
      return value).
    """
    S, B, V = decoder_out.shape
    unk_col = unk_idx % V
    n_rows = S * B
    out_dtype = decoder_out.dtype

    # ---- Kernel 1: softmax + UNK mask over all (S*B, V) rows ----
    x2 = decoder_out.reshape(n_rows, V)
    rows, vmem_limit = _kernel1_tiling(n_rows, V, jnp.dtype(out_dtype).itemsize)
    grid = (pl.cdiv(n_rows, rows),)

    word_prob2 = pl.pallas_call(
        functools.partial(_softmax_mask_kernel, unk_col=unk_col),
        out_shape=jax.ShapeDtypeStruct((n_rows, V), out_dtype),
        grid_spec=pltpu.PrefetchScalarGridSpec(
            num_scalar_prefetch=0,
            grid=grid,
            in_specs=[pl.BlockSpec((rows, V), lambda i: (i, 0))],
            out_specs=pl.BlockSpec((rows, V), lambda i: (i, 0)),
        ),
        compiler_params=pltpu.CompilerParams(
            dimension_semantics=("parallel",),      # shard across TCs on v7x
            vmem_limit_bytes=vmem_limit,
        ),
    )(x2)
    word_prob = word_prob2.reshape(S, B, V)

    # ---- Kernel 2: sampling from the s == 0 probabilities (no recompute) ----
    # Pad the vocab to a multiple of 128 and lay the 128-lane blocks out
    # block-major (nb, B, 128) so the kernel only needs first-axis dynamic
    # indexing.  This is a small one-time XLA slice/pad/transpose of (B, V).
    v_pad = ((V + _LANE - 1) // _LANE) * _LANE
    nb = v_pad // _LANE
    p0 = word_prob[0]                                        # (B, V)
    if v_pad != V:
        p0 = jnp.pad(p0, ((0, 0), (0, v_pad - V)))
    p_blocks = p0.reshape(B, nb, _LANE).transpose(1, 0, 2)   # (nb, B, 128)

    # TODO(synk): for very large B*V (p_blocks >> VMEM) stream the blocks from
    # HBM with manual DMA instead of a single resident VMEM buffer.
    sample_idx = pl.pallas_call(
        functools.partial(_sample_kernel, v=V),
        out_shape=jax.ShapeDtypeStruct((B, 1), jnp.int32),
        compiler_params=pltpu.CompilerParams(
            vmem_limit_bytes=vmem_limit,
        ),
    )(u, p_blocks)

    # TODO(synk): the module's host-side `self.ids` bookkeeping
    # (append/collect/clear) is Python list state, not a kernel.
    return word_prob, sample_idx


if __name__ == "__main__":
    key = jax.random.PRNGKey(0)
    k_logits, k_u = jax.random.split(key)

    # small shapes implied by the forward: (seq, batch, vocab)
    S, B, V = 3, 8, 128
    unk_idx = -1

    decoder_out = jax.random.normal(k_logits, (S, B, V), dtype=jnp.float32)
    u = jax.random.uniform(k_u, (B, 1), dtype=jnp.float32)

    word_prob, sample_idx = sample_feedback_forward(decoder_out, u, unk_idx=unk_idx)
    jax.block_until_ready((word_prob, sample_idx))

    unk_col = unk_idx % V

    # --- word_prob check vs pure-JAX reference ---
    ref_p = jax.nn.softmax(decoder_out, axis=-1)
    ref_p = ref_p.at[:, :, unk_col].set(0.0)
    assert word_prob.dtype == decoder_out.dtype
    assert jnp.allclose(word_prob, ref_p, atol=1e-5, rtol=1e-5)

    # --- sampling check: inverse-CDF bracketing against the reference CDF ---
    p0 = ref_p[0]                                     # (B, V)
    cdf = jnp.cumsum(p0, axis=-1)
    total = cdf[:, -1:]
    thr = jnp.clip(u, jnp.finfo(jnp.float32).tiny, 1.0) * total
    idx = sample_idx

    assert sample_idx.shape == (B, 1)
    assert bool(jnp.all((idx >= 0) & (idx < V)))
    assert bool(jnp.all(idx != unk_col))              # never the zeroed UNK col
    picked_p = jnp.take_along_axis(p0, idx, axis=-1)
    assert bool(jnp.all(picked_p > 0.0))              # never a zero-prob token
    hi = jnp.take_along_axis(cdf, idx, axis=-1)
    lo = jnp.where(idx > 0,
                   jnp.take_along_axis(cdf, jnp.maximum(idx - 1, 0), axis=-1),
                   jnp.float32(0.0))
    tol = 1e-3                                        # covers FP summation-order skew
    assert bool(jnp.all(lo <= thr + tol))
    assert bool(jnp.all(hi >= thr - tol))

    print("KERNEL_OK")
</pallas_src>

<mosaic_0001>
module attributes {stable_mosaic.version = 11 : i64} {
  func.func @_softmax_mask_kernel(%arg0: i32, %arg1: memref<16x128xf32, #tpu.memory_space<vmem>>, %arg2: memref<16x128xf32, #tpu.memory_space<vmem>>) attributes {dimension_semantics = [#tpu.dimension_semantics<parallel>], iteration_bounds = array<i64: 2>, scalar_prefetch = 0 : i64, scratch_operands = 0 : i64, tpu.core_type = #tpu.core_type<tc>, window_params = [{transform_indices = @transform_0, window_bounds = array<i64: 16, 128>}, {transform_indices = @transform_1, window_bounds = array<i64: 16, 128>}]} {
    %c0 = arith.constant 0 : index
    %c0_0 = arith.constant 0 : index
    %0 = vector.load %arg1[%c0, %c0_0] : memref<16x128xf32, #tpu.memory_space<vmem>>, vector<16x128xf32>
    %cst = arith.constant dense<0xFF800000> : vector<16xf32>
    %1 = vector.multi_reduction <maximumf>, %0, %cst [1] : vector<16x128xf32> to vector<16xf32>
    %2 = vector.shape_cast %1 : vector<16xf32> to vector<16x1xf32>
    %3 = vector.broadcast %2 : vector<16x1xf32> to vector<16x128xf32>
    %4 = arith.subf %0, %3 : vector<16x128xf32>
    %5 = math.exp %4 : vector<16x128xf32>
    %cst_1 = arith.constant dense<0.000000e+00> : vector<16xf32>
    %6 = vector.multi_reduction <add>, %5, %cst_1 [1] : vector<16x128xf32> to vector<16xf32>
    %7 = vector.shape_cast %6 : vector<16xf32> to vector<16x1xf32>
    %8 = tpu.reciprocal %7 : vector<16x1xf32> -> vector<16x1xf32>
    %9 = vector.broadcast %8 : vector<16x1xf32> to vector<16x128xf32>
    %10 = arith.mulf %5, %9 : vector<16x128xf32>
    %c0_2 = arith.constant 0 : index
    %c0_3 = arith.constant 0 : index
    %11 = vector.load %arg2[%c0_2, %c0_3] : memref<16x128xf32, #tpu.memory_space<vmem>>, vector<16x128xf32>
    tpu.vector_store %arg2[%c0_2, %c0_3], %10 {strides = array<i32>} : memref<16x128xf32, #tpu.memory_space<vmem>>, vector<16x128xf32>,
    %cst_4 = arith.constant 0.000000e+00 : f32
    %12 = vector.broadcast %cst_4 : f32 to vector<16x1xf32>
    %c0_5 = arith.constant 0 : index
    %c127 = arith.constant 127 : index
    %13 = vector.load %arg2[%c0_5, %c127] : memref<16x128xf32, #tpu.memory_space<vmem>>, vector<16x1xf32>
    tpu.vector_store %arg2[%c0_5, %c127], %12 {strides = array<i32>} : memref<16x128xf32, #tpu.memory_space<vmem>>, vector<16x1xf32>,
    return
  }
  func.func @transform_0(%arg0: i32) -> (i32, i32) {
    %c0_i32 = arith.constant 0 : i32
    %c0_i32_0 = arith.constant 0 : i32
    return %arg0, %c0_i32 : i32, i32
  }
  func.func @transform_1(%arg0: i32) -> (i32, i32) {
    %c0_i32 = arith.constant 0 : i32
    %c0_i32_0 = arith.constant 0 : i32
    return %arg0, %c0_i32 : i32, i32
  }
}

</mosaic_0001>

<llo_original>
// kernel: tpu_custom_call.1
$region0: #{tpu_custom_call.1}
  #allocation0 [shape = 'u32[]', space=smem, size = 0x4, offset = 0x4, fixed_abs, tag = 'smem constant byte address 0x4 - core index']
  #allocation1 [shape = 'u32[144,128]{1,0:T(1,128)}', space=vmem, size = 0x12000, scoped, tag = 'internal scratch']
  %s0 = inlined_call_operand.hbm [shape: f32[24,128], index: 0, kind: input, shape index: {}]
  %s1 = inlined_call_operand.hbm [shape: f32[24,128], index: 1, kind: output, shape index: {}]
  %s2 = sld [smem:[#allocation0]]
  $region41: #{tpu_custom_call.1} parent=0
    _
  %s4 = ssub.s32 1, %s2
  %s5 = scalar_select 0, %s4, %s2
  $region1: #{tpu_custom_call.1} parent=0
    #allocation2 [shape = 'u8[16384]{0}', space=vmem, size = 0x4000, scoped, tag = 'input window, operand 0']
    #allocation3 [shape = 's32[2]{0}', space=sflag, size = 0x8, scoped, tag = 'scoped memory for tpu_custom_call.1']
    #allocation4 [shape = 's32[2]{0}', space=sflag, size = 0x8, scoped, tag = 'scoped memory for tpu_custom_call.1']
    #allocation5 [shape = 'u8[16384]{0}', space=vmem, size = 0x4000, scoped, tag = 'output window, operand 0']
    %6 = vsyncpa [#allocation3], 0
    %s7 = scalar_lea.sflag [#allocation3], 1
    %8 = vsyncpa %s7, 0
    %9 = vsyncpa [#allocation4], 0
    %s10 = scalar_lea.sflag [#allocation4], 1
    %11 = vsyncpa %s10, 0
    loop: start=0, step=1, limit=4
    $region2: #{tpu_custom_call.1} parent=1 // loop_pre_header
      _
    $region3: #{tpu_custom_call.1} parent=1 // loop_header
      %s13 = sphi 0, %s17
      %p14 = scmp.ge.s32.totalorder %s13, 4
      %s23 = sphi 0, %s25
      %s26 = sphi 0, %s23
      %s27 = sphi 0, %s26
      %s43 = sphi 0, %s27
      %s49 = sphi 0, %s51
      %s52 = sphi 0, %s49
      %s53 = sphi 0, %s52
      %s69 = sphi 0, %s53
    $region4: #{tpu_custom_call.1} parent=1 // loop_header_branch
      %16 = sbr.rel (%p14) target = $region8
    $region5: #{tpu_custom_call.1} parent=1 // loop_body
      %s18 = ssub.s32 %s13, 1
      %s19 = ssub.s32 %s13, 2
      %s20 = sadd.s32 %s13, 1
      %s21 = ssub.s32 %s13, %s20
      %p22 = scmp.eq.s32.totalorder %s21, 0
      %s24 = sadd.s32 %s23, 1
      %s25 = scalar_select %p22, %s23, %s24
      %p28 = pneg %p22
      %p29 = scmp.eq.s32.totalorder %s13, 1
      %p30 = por %p28, %p29
      %p31 = scmp.ne.s32.totalorder %s23, %s26
      %p32 = scmp.eq.s32.totalorder %s13, 0
      %p33 = por %p31, %p32
      %p34 = scmp.ne.s32.totalorder %s23, %s26
      %p35 = scmp.eq.s32.totalorder %s18, 1
      %p36 = por %p34, %p35
      %p37 = scmp.ne.s32.totalorder %s26, %s27
      %p38 = scmp.eq.s32.totalorder %s18, 0
      %p39 = por %p37, %p38
      %p40 = scmp.ne.s32.totalorder %s26, %s27
      %p41 = scmp.eq.s32.totalorder %s19, 1
      %p42 = por %p40, %p41
      %p44 = scmp.ne.s32.totalorder %s27, %s43
      %p45 = scmp.eq.s32.totalorder %s19, 0
      %p46 = por %p44, %p45
      %s47 = ssub.s32 %s13, %s20
      %p48 = scmp.eq.s32.totalorder %s47, 0
      %s50 = sadd.s32 %s49, 1
      %s51 = scalar_select %p48, %s49, %s50
      %p54 = pneg %p48
      %p55 = scmp.eq.s32.totalorder %s13, 1
      %p56 = por %p54, %p55
      %p57 = scmp.ne.s32.totalorder %s49, %s52
      %p58 = scmp.eq.s32.totalorder %s13, 0
      %p59 = por %p57, %p58
      %p60 = scmp.ne.s32.totalorder %s49, %s52
      %p61 = scmp.eq.s32.totalorder %s18, 1
      %p62 = por %p60, %p61
      %p63 = scmp.ne.s32.totalorder %s52, %s53
      %p64 = scmp.eq.s32.totalorder %s18, 0
      %p65 = por %p63, %p64
      %p66 = scmp.ne.s32.totalorder %s52, %s53
      %p67 = scmp.eq.s32.totalorder %s19, 1
      %p68 = por %p66, %p67
      %p70 = scmp.ne.s32.totalorder %s53, %s69
      %p71 = scmp.eq.s32.totalorder %s19, 0
      %p72 = por %p70, %p71
      %p73 = scmp.le.s32.totalorder 1, %s13
      %p74 = scmp.lt.s32.totalorder %s13, 3
      %p75 = pnand %p73, %p74
      %p76 = pneg %p75
      // Predicated region
      $region9: #{tpu_custom_call.1} parent=5 // pred_check
        _
      $region10: #{tpu_custom_call.1} parent=5 // pred_check_branch
        %78 = sbr.rel (%p75) target = $region12
      $region11: #{tpu_custom_call.1} parent=5 // pred_region
        %s79 = ssub.s32 %s13, 1
      $region12: #{tpu_custom_call.1} parent=5 // pred_fallthru
        _
      %p80 = scmp.lt.s32.totalorder %s13, 2
      // Predicated region
      $region13: #{tpu_custom_call.1} parent=5 // pred_check
        %p81 = pneg %p80
      $region14: #{tpu_custom_call.1} parent=5 // pred_check_branch
        %83 = sbr.rel (%p81) target = $region16
      $region15: #{tpu_custom_call.1} parent=5 // pred_region
        // Predicated region
        $region17: #{tpu_custom_call.1} parent=15 // pred_check
          %p84 = pneg %p33
        $region18: #{tpu_custom_call.1} parent=15 // pred_check_branch
          %86 = sbr.rel (%p84) target = $region20
        $region19: #{tpu_custom_call.1} parent=15 // pred_region
          %s87 = sand.u32 %s23, 1
          %s88 = scalar_lea.sflag [#allocation3], %s87
          %s89 = sand.u32 %s23, 1
          %s90 = smul.addr %s89, 16
          %s91 = scalar_lea.vmem [#allocation2], %s90
          %s92 = smul.u32 2, %s13
          %s93 = ssub.s32 3, %s92
          %p94 = scmp.lt.s32.totalorder %s93, 2
          %s95 = scalar_select %p94, %s93, 2
          %s96 = smul.u32 128, %s95
          %s98 = ssub.s32 256, %s96
          %99 = vsyncadd %s88, %s98
          %p100 = scmp.ne.s32.totalorder 0, %s96
          %s101 = smul.addr %s92, 128
          %s102 = scalar_lea.hbm %s0, %s101
          %s103 = smul.u32 8, %s95
          %s104 = sshll.u32 %s91, 4
          %s105 = int_to_ptr.vmem [resolvable:$true] %s104
          %s106 = sshll.u32 %s103, 4
          %110 = dma.hbm_to_vmem [thread:$0]  (%p100), %s102, %s106, %s105, %s88, 128, 128, 8
        $region20: #{tpu_custom_call.1} parent=15 // pred_fallthru
          _
      $region16: #{tpu_custom_call.1} parent=5 // pred_fallthru
        _
      %p111 = scmp.le.s32.totalorder 1, %s13
      %p112 = scmp.lt.s32.totalorder %s13, 3
      %p113 = pnand %p111, %p112
      %p114 = pneg %p113
      // Predicated region
      $region21: #{tpu_custom_call.1} parent=5 // pred_check
        _
      $region22: #{tpu_custom_call.1} parent=5 // pred_check_branch
        %116 = sbr.rel (%p113) target = $region24
      $region23: #{tpu_custom_call.1} parent=5 // pred_region
        %s117 = ssub.s32 %s13, 1
        %s118 = sand.u32 %s26, 1
        %s119 = scalar_lea.sflag [#allocation3], %s118
        %s120 = sand.u32 %s26, 1
        %s121 = smul.addr %s120, 16
        %s122 = scalar_lea.vmem [#allocation2], %s121
        // Predicated region
        $region25: #{tpu_custom_call.1} parent=23 // pred_check
          %p123 = pneg %p39
        $region26: #{tpu_custom_call.1} parent=23 // pred_check_branch
          %125 = sbr.rel (%p123) target = $region28
        $region27: #{tpu_custom_call.1} parent=23 // pred_region
          %126 = dma.done %s119, 256
        $region28: #{tpu_custom_call.1} parent=23 // pred_fallthru
          _
        %s127 = sand.u32 %s26, 1
        %s128 = scalar_lea.sflag [#allocation3], %s127
        %s129 = sand.u32 %s26, 1
        %s130 = smul.addr %s129, 16
        %s131 = scalar_lea.vmem [#allocation2], %s130
        %p132 = pneg %p39
        %p133 = pneg %p36
        %p134 = pneg %p65
        %p135 = pneg %p62
        %s136 = sand.u32 %s52, 1
        %s137 = scalar_lea.sflag [#allocation4], %s136
        %s138 = sand.u32 %s52, 1
        %s139 = smul.addr %s138, 16
        %s140 = scalar_lea.vmem [#allocation5], %s139
        %s141 = smul.u32 2, %s18
        %s142 = ssub.s32 3, %s141
        %p143 = scmp.lt.s32.totalorder %s142, 2
        %s144 = scalar_select %p143, %s142, 2
        %s145 = smul.u32 128, %s144
        %s146 = smul.u32 2, %s18
        %s147 = ssub.s32 3, %s146
        %p148 = scmp.lt.s32.totalorder %s147, 2
        %s149 = scalar_select %p148, %s147, 2
        %s150 = smul.u32 128, %s149
        %v151 = vld [vmem:[%s122] sm:$0xff]
        %v152 = vld [vmem:[%s122 + $0x8] sm:$0xff]
        %153 = vmax.xlane.f32.xlu0 %v151
        %v154 = vpop.xlane.xlu0 %153
        %155 = vmax.xlane.f32.xlu0 %v152
        %v156 = vpop.xlane.xlu0 %155
        %v157 = vsub.f32 %v151, %v154
        %v158 = vsub.f32 %v152, %v156
        %v159 = vmul.f32 %v157, 1.442695
        %v160 = vpow.pop %v159
        %v161 = vmul.f32 %v158, 1.442695
        %v162 = vpow.pop %v161
        %163 = vadd.xlane.f32.xlu0 %v160
        %v164 = vpop.xlane.xlu0 %163
        %165 = vadd.xlane.f32.xlu0 %v162
        %v166 = vpop.xlane.xlu0 %165
        %v167 = vrcp.pop %v164
        %v168 = vrcp.pop %v166
        %v169 = vmul.f32 %v160, %v167
        %v170 = vmul.f32 %v162, %v168
        %171 = vst [vmem:[%s140] sm:$0xff] %v169
        %172 = vst [vmem:[%s140 + $0x8] sm:$0xff] %v170
        %vm173 = vcmask 1048568
        %174 = vst.msk [vmem:[%s140] sm:$0xff] %vm173, 0.0
        %175 = vst.msk [vmem:[%s140 + $0x8] sm:$0xff] %vm173, 0.0
        %s176 = sand.u32 %s52, 1
        %s177 = scalar_lea.sflag [#allocation4], %s176
        %s178 = sand.u32 %s52, 1
        %s179 = smul.addr %s178, 16
        %s180 = scalar_lea.vmem [#allocation5], %s179
        // Predicated region
        $region29: #{tpu_custom_call.1} parent=23 // pred_check
          %p181 = pneg %p62
        $region30: #{tpu_custom_call.1} parent=23 // pred_check_branch
          %183 = sbr.rel (%p181) target = $region32
        $region31: #{tpu_custom_call.1} parent=23 // pred_region
          %s184 = smul.u32 2, %s18
          %s185 = ssub.s32 3, %s184
          %p186 = scmp.lt.s32.totalorder %s185, 2
          %s187 = scalar_select %p186, %s185, 2
          %s188 = smul.u32 128, %s187
          %s190 = ssub.s32 256, %s188
          %191 = vsyncadd %s177, %s190
          %p192 = scmp.ne.s32.totalorder 0, %s188
          %s193 = smul.addr %s184, 128
          %s194 = scalar_lea.hbm %s1, %s193
          %s195 = smul.u32 8, %s187
          %s196 = sshll.u32 %s180, 4
          %s197 = int_to_ptr.vmem [resolvable:$true] %s196
          %s198 = sshll.u32 %s195, 4
          %202 = dma.vmem_to_hbm [thread:$0]  (%p192), %s197, %s198, %s194, %s177, 128, 128, 8
        $region32: #{tpu_custom_call.1} parent=23 // pred_fallthru
          _
      $region24: #{tpu_custom_call.1} parent=5 // pred_fallthru
        _
      %p203 = scmp.le.s32.totalorder 2, %s13
      // Predicated region
      $region33: #{tpu_custom_call.1} parent=5 // pred_check
        %p204 = pneg %p203
      $region34: #{tpu_custom_call.1} parent=5 // pred_check_branch
        %206 = sbr.rel (%p204) target = $region36
      $region35: #{tpu_custom_call.1} parent=5 // pred_region
        %s207 = ssub.s32 %s13, 2
        // Predicated region
        $region37: #{tpu_custom_call.1} parent=35 // pred_check
          %p208 = pneg %p68
        $region38: #{tpu_custom_call.1} parent=35 // pred_check_branch
          %210 = sbr.rel (%p208) target = $region40
        $region39: #{tpu_custom_call.1} parent=35 // pred_region
          %s211 = sand.u32 %s53, 1
          %s212 = scalar_lea.sflag [#allocation4], %s211
          %s213 = sand.u32 %s53, 1
          %s214 = smul.addr %s213, 16
          %s215 = scalar_lea.vmem [#allocation5], %s214
          %216 = dma.done %s212, 256
        $region40: #{tpu_custom_call.1} parent=35 // pred_fallthru
          _
      $region36: #{tpu_custom_call.1} parent=5 // pred_fallthru
        _
    $region6: #{tpu_custom_call.1} parent=1 // loop_footer
      %s17 = sadd.s32 1, %s13
    $region7: #{tpu_custom_call.1} parent=1 // loop_footer_branch
      %12 = sbr.rel target = $region3
    $region8: #{tpu_custom_call.1} parent=1 // loop_exit
      _
    %217 = vsyncpa [#allocation3], 1
    %s218 = scalar_lea.sflag [#allocation3], 1
    %219 = vsyncpa %s218, 1
    %220 = vsyncpa [#allocation4], 1
    %s221 = scalar_lea.sflag [#allocation4], 1
    %222 = vsyncpa %s221, 1

</llo_original>
